<compile_context>
chip_gen: v7x
topology: tpu7x:2x2x1
jax: 0.10.0
libtpu: 0.0.40
codegen_flags: <defaults>
</compile_context>

<pallas_src>
import functools

import jax
import jax.numpy as jnp
from jax import lax
from jax.experimental import pallas as pl
from jax.experimental.pallas import tpu as pltpu


def _cdiv(a, b):
    return -(-a // b)


def _round_up(a, m):
    return _cdiv(a, m) * m


def _int_pow(x, n):
    """x**n for a static non-negative integer n, unrolled multiply chain (VPU only)."""
    if n == 0:
        return jnp.ones_like(x)
    acc = None
    base = x
    while n > 0:
        if n & 1:
            acc = base if acc is None else acc * base
        n >>= 1
        if n:
            base = base * base
    return acc


def _focal_loss_kernel(p_ref, y_ref, acc_ref, *, gamma, alpha, B, C, tr, cb,
                       need_row_mask, need_col_mask, binary_labels):
    i = pl.program_id(1)                    # row-block index (reduction axis)

    # The (8, cb) output block is resident across the reduction axis.
    @pl.when(i == 0)
    def _():
        acc_ref[...] = jnp.zeros_like(acc_ref)

    p = p_ref[...].astype(jnp.float32)      # (tr, cb)

    if binary_labels:
        # Binary labels: replace the arithmetic formula with selects and
        # folded constants (fewer VALU ops; identical result for y in {0,1}).
        yb = y_ref[...].astype(jnp.float32) != 0.0
        one_minus_p = 1.0 - p
        pt = jnp.where(yb, p, one_minus_p)
        one_minus_pt = jnp.where(yb, one_minus_p, p)
        neg_alpha_t = jnp.where(yb, jnp.float32(-alpha), jnp.float32(alpha - 1.0))
    else:
        # General (float-label) path: exact module formula.
        y = y_ref[...].astype(jnp.float32)
        sgn = 2.0 * y - 1.0
        pt = (y - 1.0 + p) * sgn            # (labels - (1 - p)) * (2*labels - 1)
        one_minus_pt = 1.0 - pt
        neg_alpha_t = -(y - 1.0 + alpha) * sgn

    # Ragged-edge masking (only generated when the block can overhang B / C).
    valid = None
    if need_row_mask:
        row_ids = lax.broadcasted_iota(jnp.int32, (tr, cb), 0) + i * tr
        valid = row_ids < B
    if need_col_mask:
        col_ids = lax.broadcasted_iota(jnp.int32, (tr, cb), 1) + pl.program_id(0) * cb
        cmask = col_ids < C
        valid = cmask if valid is None else (valid & cmask)
    if valid is not None:
        # Guard the log against OOB garbage: log(1) == 0.
        pt = jnp.where(valid, pt, 1.0)

    g = float(gamma)
    if g.is_integer() and g >= 0:
        pow_term = _int_pow(one_minus_pt, int(g))   # no EUP pow for integer gamma
    else:
        pow_term = one_minus_pt ** gamma            # true float-power fallback

    loss = neg_alpha_t * pow_term * jnp.log(pt)
    if valid is not None:
        # Select (not multiply) so any NaN produced from garbage lanes is dropped.
        loss = jnp.where(valid, loss, 0.0)

    # Fold onto the (8, cb) vreg-shaped accumulator: pure VPU adds, no
    # cross-lane movement; the single final reduce happens in the wrapper.
    acc_ref[...] += loss.reshape(tr // 8, 8, cb).sum(axis=0)


def focal_loss(logits, labels, *, gamma=2, alpha=1.0, size_average=True,
               block_bytes=2 << 20):
    """logits, labels: (B, C) arrays (labels binary / broadcastable elementwise).

    Labels may be bool / int8 / int32 (treated as binary 0/1) or float
    (general formula). Returns a scalar f32 loss with the module's semantics.
    """
    B, C = logits.shape
    assert labels.shape == (B, C), "labels must match logits shape elementwise"

    if labels.dtype == jnp.bool_:
        labels = labels.astype(jnp.int8)    # 1-byte; avoids i1 DMA quirks
    binary_labels = bool(jnp.issubdtype(labels.dtype, jnp.integer))

    # Column blocking: full-C last dim when small, else lane-dense 512 blocks.
    if C <= 512:
        cb, nc = C, 1
    else:
        cb = 512
        nc = _cdiv(C, cb)
    need_col_mask = nc * cb != C

    # Row blocking: multiples of 32 (covers f32/bf16/int8 sublane packing),
    # sized so one f32 logits block is ~block_bytes in (lane-padded) VMEM.
    cb_pad = _round_up(cb, 128)
    tr_budget = max(32, (block_bytes // (4 * cb_pad)) // 32 * 32)
    tr = min(_round_up(B, 32), tr_budget)
    nr = _cdiv(B, tr)
    need_row_mask = nr * tr != B

    kernel = functools.partial(
        _focal_loss_kernel, gamma=gamma, alpha=alpha, B=B, C=C, tr=tr, cb=cb,
        need_row_mask=need_row_mask, need_col_mask=need_col_mask,
        binary_labels=binary_labels)

    partial_sums = pl.pallas_call(
        kernel,
        out_shape=jax.ShapeDtypeStruct((nc, 8, cb), jnp.float32),
        grid_spec=pltpu.PrefetchScalarGridSpec(
            num_scalar_prefetch=0,
            grid=(nc, nr),
            in_specs=[
                pl.BlockSpec((tr, cb), lambda j, i: (i, j)),
                pl.BlockSpec((tr, cb), lambda j, i: (i, j)),
            ],
            out_specs=pl.BlockSpec((None, 8, cb), lambda j, i: (j, 0, 0)),
        ),
        compiler_params=pltpu.CompilerParams(
            dimension_semantics=("parallel", "arbitrary")),
    )(logits, labels)

    total = jnp.sum(partial_sums)           # one small final reduce, done by XLA
    if size_average:
        return total / jnp.float32(B)
    return total


def focal_loss_ref(logits, labels, *, gamma=2, alpha=1.0, size_average=True):
    p = logits.astype(jnp.float32)
    y = labels.astype(jnp.float32)
    pt = (y - (1.0 - p)) * (2.0 * y - 1.0)
    alpha_t = (y - (1.0 - alpha)) * (2.0 * y - 1.0)
    loss = -alpha_t * (1.0 - pt) ** gamma * jnp.log(pt)
    s = jnp.sum(loss)
    return s / logits.shape[0] if size_average else s


if __name__ == "__main__":
    key = jax.random.PRNGKey(0)
    k1, k2, k3, k4, k5, k6 = jax.random.split(key, 6)

    # Case 1: default module config (gamma=2, alpha=1.0), small non-aligned
    # shape, binary labels kept in a narrow dtype (int8 -> binary fast path).
    B, C = 8, 16
    logits = jax.nn.sigmoid(jax.random.normal(k1, (B, C), dtype=jnp.float32))
    labels_i8 = jax.random.bernoulli(k2, 0.3, (B, C)).astype(jnp.int8)
    out = focal_loss(logits, labels_i8, gamma=2, alpha=1.0, size_average=True)
    out = jax.block_until_ready(out)
    ref = focal_loss_ref(logits, labels_i8, gamma=2, alpha=1.0, size_average=True)
    assert jnp.allclose(out, ref, rtol=1e-5, atol=1e-4), (out, ref)

    # Case 2: ragged rows (row mask path), float labels -> general formula,
    # fractional gamma (pow fallback), size_average=False.
    B2, C2 = 50, 130
    logits2 = jax.nn.sigmoid(jax.random.normal(k3, (B2, C2), dtype=jnp.float32))
    labels2 = jax.random.bernoulli(k4, 0.4, (B2, C2)).astype(jnp.float32)
    out2 = focal_loss(logits2, labels2, gamma=1.5, alpha=0.25, size_average=False)
    out2 = jax.block_until_ready(out2)
    ref2 = focal_loss_ref(logits2, labels2, gamma=1.5, alpha=0.25, size_average=False)
    assert jnp.allclose(out2, ref2, rtol=1e-5, atol=1e-4), (out2, ref2)

    # Case 3: C > 512 exercises column blocking + ragged-column masking.
    B3, C3 = 40, 650
    logits3 = jax.nn.sigmoid(jax.random.normal(k5, (B3, C3), dtype=jnp.float32))
    labels3 = jax.random.bernoulli(k6, 0.2, (B3, C3)).astype(jnp.int8)
    out3 = focal_loss(logits3, labels3, gamma=2, alpha=0.75, size_average=True)
    out3 = jax.block_until_ready(out3)
    ref3 = focal_loss_ref(logits3, labels3, gamma=2, alpha=0.75, size_average=True)
    assert jnp.allclose(out3, ref3, rtol=1e-5, atol=1e-4), (out3, ref3)

    print("KERNEL_OK")
</pallas_src>

<mosaic_0001>
module attributes {stable_mosaic.version = 11 : i64} {
  func.func @_focal_loss_kernel(%arg0: i32, %arg1: i32, %arg2: memref<32x16xf32, #tpu.memory_space<vmem>>, %arg3: memref<32x16xi8, #tpu.memory_space<vmem>>, %arg4: memref<1x8x16xf32, #tpu.memory_space<vmem>>) attributes {dimension_semantics = [#tpu.dimension_semantics<parallel>, #tpu.dimension_semantics<arbitrary>], iteration_bounds = array<i64: 1, 1>, scalar_prefetch = 0 : i64, scratch_operands = 0 : i64, tpu.core_type = #tpu.core_type<tc>, window_params = [{transform_indices = @transform_0, window_bounds = array<i64: 32, 16>}, {transform_indices = @transform_1, window_bounds = array<i64: 32, 16>}, {transform_indices = @transform_2, window_bounds = array<i64: 1, 8, 16>}]} {
    %c0_i32 = arith.constant 0 : i32
    %0 = arith.cmpi eq, %arg1, %c0_i32 : i32
    %1 = arith.extui %0 : i1 to i32
    %c0_i32_0 = arith.constant 0 : i32
    %2 = arith.cmpi ne, %1, %c0_i32_0 : i32
    scf.if %2 {
      %cst_16 = arith.constant 0.000000e+00 : f32
      %37 = vector.broadcast %cst_16 : f32 to vector<8x16xf32>
      %c0_17 = arith.constant 0 : index
      %c0_18 = arith.constant 0 : index
      %c0_19 = arith.constant 0 : index
      %38 = vector.load %arg4[%c0_17, %c0_18, %c0_19] : memref<1x8x16xf32, #tpu.memory_space<vmem>>, vector<1x8x16xf32>
      %39 = vector.shape_cast %38 : vector<1x8x16xf32> to vector<8x16xf32>
      %40 = vector.shape_cast %37 : vector<8x16xf32> to vector<1x8x16xf32>
      tpu.vector_store %arg4[%c0_17, %c0_18, %c0_19], %40 {strides = array<i32>} : memref<1x8x16xf32, #tpu.memory_space<vmem>>, vector<1x8x16xf32>,
    } else {
    }
    %c0 = arith.constant 0 : index
    %c0_1 = arith.constant 0 : index
    %3 = vector.load %arg2[%c0, %c0_1] : memref<32x16xf32, #tpu.memory_space<vmem>>, vector<32x16xf32>
    %c0_2 = arith.constant 0 : index
    %c0_3 = arith.constant 0 : index
    %4 = vector.load %arg3[%c0_2, %c0_3] : memref<32x16xi8, #tpu.memory_space<vmem>>, vector<32x16xi8>
    %5 = arith.sitofp %4 : vector<32x16xi8> to vector<32x16xf32>
    %cst = arith.constant 0.000000e+00 : f32
    %6 = vector.broadcast %cst : f32 to vector<32x16xf32>
    %7 = arith.cmpf one, %5, %6 : vector<32x16xf32>
    %cst_4 = arith.constant 1.000000e+00 : f32
    %8 = vector.broadcast %cst_4 : f32 to vector<32x16xf32>
    %9 = arith.subf %8, %3 : vector<32x16xf32>
    %10 = arith.select %7, %3, %9 : vector<32x16xi1>, vector<32x16xf32>
    %11 = arith.select %7, %9, %3 : vector<32x16xi1>, vector<32x16xf32>
    %cst_5 = arith.constant -1.000000e+00 : f32
    %cst_6 = arith.constant 0.000000e+00 : f32
    %12 = vector.broadcast %cst_5 : f32 to vector<32x16xf32>
    %13 = vector.broadcast %cst_6 : f32 to vector<32x16xf32>
    %14 = arith.select %7, %12, %13 : vector<32x16xi1>, vector<32x16xf32>
    %15 = tpu.iota {dimensions = array<i32: 0>} : vector<32x16xi32>
    %c32_i32 = arith.constant 32 : i32
    %16 = arith.muli %arg1, %c32_i32 : i32
    %17 = vector.broadcast %16 : i32 to vector<32x16xi32>
    %18 = arith.addi %15, %17 : vector<32x16xi32>
    %c8_i32 = arith.constant 8 : i32
    %19 = vector.broadcast %c8_i32 : i32 to vector<32x16xi32>
    %20 = arith.cmpi slt, %18, %19 : vector<32x16xi32>
    %cst_7 = arith.constant 1.000000e+00 : f32
    %21 = vector.broadcast %cst_7 : f32 to vector<32x16xf32>
    %22 = arith.select %20, %10, %21 : vector<32x16xi1>, vector<32x16xf32>
    %23 = arith.mulf %11, %11 : vector<32x16xf32>
    %24 = arith.mulf %14, %23 : vector<32x16xf32>
    %25 = math.log %22 : vector<32x16xf32>
    %26 = arith.mulf %24, %25 : vector<32x16xf32>
    %cst_8 = arith.constant 0.000000e+00 : f32
    %27 = vector.broadcast %cst_8 : f32 to vector<32x16xf32>
    %28 = arith.select %20, %26, %27 : vector<32x16xi1>, vector<32x16xf32>
    %c0_9 = arith.constant 0 : index
    %c0_10 = arith.constant 0 : index
    %c0_11 = arith.constant 0 : index
    %29 = vector.load %arg4[%c0_9, %c0_10, %c0_11] : memref<1x8x16xf32, #tpu.memory_space<vmem>>, vector<1x8x16xf32>
    %30 = vector.shape_cast %29 : vector<1x8x16xf32> to vector<8x16xf32>
    %31 = vector.shape_cast %28 : vector<32x16xf32> to vector<4x8x16xf32>
    %cst_12 = arith.constant dense<0.000000e+00> : vector<8x16xf32>
    %32 = vector.multi_reduction <add>, %31, %cst_12 [0] : vector<4x8x16xf32> to vector<8x16xf32>
    %33 = arith.addf %30, %32 : vector<8x16xf32>
    %c0_13 = arith.constant 0 : index
    %c0_14 = arith.constant 0 : index
    %c0_15 = arith.constant 0 : index
    %34 = vector.load %arg4[%c0_13, %c0_14, %c0_15] : memref<1x8x16xf32, #tpu.memory_space<vmem>>, vector<1x8x16xf32>
    %35 = vector.shape_cast %34 : vector<1x8x16xf32> to vector<8x16xf32>
    %36 = vector.shape_cast %33 : vector<8x16xf32> to vector<1x8x16xf32>
    tpu.vector_store %arg4[%c0_13, %c0_14, %c0_15], %36 {strides = array<i32>} : memref<1x8x16xf32, #tpu.memory_space<vmem>>, vector<1x8x16xf32>,
    return
  }
  func.func @transform_0(%arg0: i32, %arg1: i32) -> (i32, i32) {
    %c0_i32 = arith.constant 0 : i32
    return %arg1, %arg0 : i32, i32
  }
  func.func @transform_1(%arg0: i32, %arg1: i32) -> (i32, i32) {
    %c0_i32 = arith.constant 0 : i32
    return %arg1, %arg0 : i32, i32
  }
  func.func @transform_2(%arg0: i32, %arg1: i32) -> (i32, i32, i32) {
    %c0_i32 = arith.constant 0 : i32
    %c0_i32_0 = arith.constant 0 : i32
    %c0_i32_1 = arith.constant 0 : i32
    return %arg0, %c0_i32, %c0_i32_0 : i32, i32, i32
  }
}

</mosaic_0001>

<llo_original>
// kernel: tpu_custom_call.1
$region0: #{tpu_custom_call.1}
  #allocation0 [shape = 'u32[]', space=smem, size = 0x4, offset = 0x4, fixed_abs, tag = 'smem constant byte address 0x4 - core index']
  #allocation1 [shape = 'u32[144,128]{1,0:T(1,128)}', space=vmem, size = 0x12000, scoped, tag = 'internal scratch']
  %s0 = inlined_call_operand.hbm [shape: f32[8,16], index: 0, kind: input, shape index: {}]
  %s1 = inlined_call_operand.vmem [shape: s8[8,16], index: 1, kind: input, shape index: {}]
  %s2 = inlined_call_operand.hbm [shape: f32[1,8,16], index: 2, kind: output, shape index: {}]
  %s3 = sld [smem:[#allocation0]]
  $region26: #{tpu_custom_call.1} parent=0
    _
  %s5 = ssub.s32 1, %s3
  %s6 = scalar_select 0, %s5, %s3
  $region1: #{tpu_custom_call.1} parent=0
    #allocation2 [shape = 'u8[16384]{0}', space=vmem, size = 0x4000, scoped, tag = 'input window, operand 0, single buffered']
    #allocation3 [shape = 's32[1]{0}', space=sflag, size = 0x4, scoped, tag = 'scoped memory for tpu_custom_call.1']
    #allocation4 [shape = 's32[1]{0}', space=sflag, size = 0x4, scoped, tag = 'scoped memory for tpu_custom_call.1']
    #allocation5 [shape = 'u8[4096]{0}', space=vmem, size = 0x1000, scoped, tag = 'output window, operand 0, single buffered']
    %7 = vsyncpa [#allocation3], 0
    %8 = vsyncpa [#allocation4], 0
    // Predicated region
    $region2: #{tpu_custom_call.1} parent=1 // pred_check
      _
    $region3: #{tpu_custom_call.1} parent=1 // pred_check_branch
      %10 = sbr.rel (0) target = $region5
    $region4: #{tpu_custom_call.1} parent=1 // pred_region
      %s12 = ssub.s32 512, 128
      %13 = vsyncadd [#allocation3], %s12
      %s14 = sshll.u32 [#allocation2], 4
      %s15 = int_to_ptr.vmem [resolvable:$true] %s14
      %20 = dma.hbm_to_vmem [thread:$0]  %s0, 128, %s15, [#allocation3], 128, 128, 8
    $region5: #{tpu_custom_call.1} parent=1 // pred_fallthru
      _
    // Predicated region
    $region6: #{tpu_custom_call.1} parent=1 // pred_check
      _
    $region7: #{tpu_custom_call.1} parent=1 // pred_check_branch
      %22 = sbr.rel (0) target = $region9
    $region8: #{tpu_custom_call.1} parent=1 // pred_region
      _
    $region9: #{tpu_custom_call.1} parent=1 // pred_fallthru
      _
    // Predicated region
    $region10: #{tpu_custom_call.1} parent=1 // pred_check
      _
    $region11: #{tpu_custom_call.1} parent=1 // pred_check_branch
      %24 = sbr.rel (0) target = $region13
    $region12: #{tpu_custom_call.1} parent=1 // pred_region
      %25 = dma.done [#allocation3], 512
    $region13: #{tpu_custom_call.1} parent=1 // pred_fallthru
      _
    %p26 = scmp.eq.s32.totalorder 0, 0
    // Predicated region
    $region14: #{tpu_custom_call.1} parent=1 // pred_check
      %p27 = pneg %p26
    $region15: #{tpu_custom_call.1} parent=1 // pred_check_branch
      %29 = sbr.rel (%p27) target = $region17
    $region16: #{tpu_custom_call.1} parent=1 // pred_region
      %vm30 = vcmask 130048
      %31 = vst.msk [vmem:[#allocation5] sm:$0xff] %vm30, 0.0
    $region17: #{tpu_custom_call.1} parent=1 // pred_fallthru
      _
    %v32 = vld [vmem:[#allocation2] sm:$0xff]
    %v33 = vld [vmem:[#allocation2 + $0x8] sm:$0xff]
    %v34 = vld [vmem:[#allocation2 + $0x10] sm:$0xff]
    %v35 = vld [vmem:[#allocation2 + $0x18] sm:$0xff]
    %v36 = vld [vmem:[%s1] sm:$0x3]
    %v37 = vld [vmem:[%s1 + $0x2] sm:$0x3]
    %v38 = vld [vmem:[%s1 + $0x4] sm:$0x3]
    %v39 = vld [vmem:[%s1 + $0x6] sm:$0x3]
    %v40 = vunpack.c.0.s8 %v36
    %v41 = vunpack.c.0.s8 %v37
    %v42 = vunpack.c.0.s8 %v38
    %v43 = vunpack.c.0.s8 %v39
    %v44 = vcvt.s32.f32 %v40
    %v45 = vcvt.s32.f32 %v41
    %v46 = vcvt.s32.f32 %v42
    %v47 = vcvt.s32.f32 %v43
    %vm48 = vcmp.ne.f32.partialorder %v44, 0.0
    %vm49 = vcmp.ne.f32.partialorder %v45, 0.0
    %vm50 = vcmp.ne.f32.partialorder %v46, 0.0
    %vm51 = vcmp.ne.f32.partialorder %v47, 0.0
    %v52 = vsub.f32 1.0, %v32
    %v53 = vsub.f32 1.0, %v33
    %v54 = vsub.f32 1.0, %v34
    %v55 = vsub.f32 1.0, %v35
    %v56 = vsel %vm48, %v32, %v52
    %v57 = vsel %vm49, %v33, %v53
    %v58 = vsel %vm50, %v34, %v54
    %v59 = vsel %vm51, %v35, %v55
    %v60 = vsel %vm48, %v52, %v32
    %v61 = vsel %vm49, %v53, %v33
    %v62 = vsel %vm50, %v54, %v34
    %v63 = vsel %vm51, %v55, %v35
    %v64 = vsel %vm48, -1.0, 0.0
    %v65 = vsel %vm49, -1.0, 0.0
    %v66 = vsel %vm50, -1.0, 0.0
    %v67 = vsel %vm51, -1.0, 0.0
    %v68 = vlaneseq
    %v69 = vshrl.u32 %v68, 7
    %v70 = vadd.s32 %v69, 8
    %v71 = vadd.s32 %v69, 16
    %v72 = vadd.s32 %v69, 24
    %s73 = smul.u32 0, 32
    %v74 = vstv %s73
    %v75 = vadd.s32 %v69, %v74
    %v76 = vadd.s32 %v70, %v74
    %v77 = vadd.s32 %v71, %v74
    %v78 = vadd.s32 %v72, %v74
    %vm79 = vcmp.lt.s32.totalorder %v75, 8
    %vm80 = vcmp.lt.s32.totalorder %v76, 8
    %vm81 = vcmp.lt.s32.totalorder %v77, 8
    %vm82 = vcmp.lt.s32.totalorder %v78, 8
    %v83 = vsel %vm79, %v56, 1.0
    %v84 = vsel %vm80, %v57, 1.0
    %v85 = vsel %vm81, %v58, 1.0
    %v86 = vsel %vm82, %v59, 1.0
    %v87 = vmul.f32 %v60, %v60
    %v88 = vmul.f32 %v61, %v61
    %v89 = vmul.f32 %v62, %v62
    %v90 = vmul.f32 %v63, %v63
    %v91 = vmul.f32 %v64, %v87
    %v92 = vmul.f32 %v65, %v88
    %v93 = vmul.f32 %v66, %v89
    %v94 = vmul.f32 %v67, %v90
    %v95 = vlog2.pop %v83
    %v96 = vmul.f32 %v95, 0.6931472
    %v97 = vlog2.pop %v84
    %v98 = vmul.f32 %v97, 0.6931472
    %v99 = vlog2.pop %v85
    %v100 = vmul.f32 %v99, 0.6931472
    %v101 = vlog2.pop %v86
    %v102 = vmul.f32 %v101, 0.6931472
    %v103 = vmul.f32 %v91, %v96
    %v104 = vmul.f32 %v92, %v98
    %v105 = vmul.f32 %v93, %v100
    %v106 = vmul.f32 %v94, %v102
    %v107 = vsel %vm79, %v103, 0.0
    %v108 = vsel %vm80, %v104, 0.0
    %v109 = vsel %vm81, %v105, 0.0
    %v110 = vsel %vm82, %v106, 0.0
    %v111 = vld [vmem:[#allocation5] sm:$0xff]
    %vm112 = vcmask 130048
    %v113 = vsel %vm112, %v107, 0.0
    %v114 = vsel %vm112, %v108, 0.0
    %v115 = vadd.f32 %v113, %v114
    %v116 = vsel %vm112, %v109, 0.0
    %v117 = vadd.f32 %v115, %v116
    %v118 = vsel %vm112, %v110, 0.0
    %v119 = vadd.f32 %v117, %v118
    %v120 = vadd.f32 %v111, %v119
    %121 = vst.msk [vmem:[#allocation5] sm:$0xff] %vm112, %v120
    // Predicated region
    $region18: #{tpu_custom_call.1} parent=1 // pred_check
      _
    $region19: #{tpu_custom_call.1} parent=1 // pred_check_branch
      %123 = sbr.rel (0) target = $region21
    $region20: #{tpu_custom_call.1} parent=1 // pred_region
      %s125 = ssub.s32 128, 128
      %126 = vsyncadd [#allocation4], %s125
      %s128 = sshll.u32 [#allocation5], 4
      %s129 = int_to_ptr.vmem [resolvable:$true] %s128
      %131 = dma.vmem_to_hbm [thread:$0]  %s129, 128, %s2, [#allocation4]
    $region21: #{tpu_custom_call.1} parent=1 // pred_fallthru
      _
    // Predicated region
    $region22: #{tpu_custom_call.1} parent=1 // pred_check
      _
    $region23: #{tpu_custom_call.1} parent=1 // pred_check_branch
      %133 = sbr.rel (0) target = $region25
    $region24: #{tpu_custom_call.1} parent=1 // pred_region
      %134 = dma.done [#allocation4], 128
    $region25: #{tpu_custom_call.1} parent=1 // pred_fallthru
      _
    %135 = vsyncpa [#allocation3], 1
    %136 = vsyncpa [#allocation4], 1

</llo_original>
